<compile_context>
chip_gen: v6e
topology: v6e:2x2x1
jax: 0.10.0
libtpu: 0.0.40
codegen_flags: <defaults>
</compile_context>

<pallas_src>
import functools
import math

import jax
import jax.numpy as jnp
from jax.experimental import pallas as pl
from jax.experimental.pallas import tpu as pltpu


# ----------------------------- kernels --------------------------------------


def _pe_add_kernel(x_ref, pe_ref, o_ref):
    # pe block either matches x's block shape (lane-dense 2D path) or is
    # (TS, 1, D) and broadcasts over the batch axis (D % 128 == 0 path).
    o_ref[...] = x_ref[...] + pe_ref[...]


def _pe_add_dropout_kernel(x_ref, pe_ref, bits_ref, o_ref, *, threshold, scale):
    # Training-mode forward: (x + pe) then inverted dropout.
    # keep-prob = 1 - p via integer-threshold compare; survivors scaled by 1/(1-p).
    y = x_ref[...] + pe_ref[...]
    keep = bits_ref[...] >= jnp.uint32(threshold)
    o_ref[...] = jnp.where(keep, y * scale, 0.0).astype(o_ref.dtype)


# --------------------------- parameter setup ---------------------------------


def make_positional_encoding(max_len, d_model):
    """Deterministic sinusoidal PE buffer, shape (max_len, 1, d_model)."""
    position = jnp.arange(max_len, dtype=jnp.float32)[:, None]
    div_term = jnp.exp(
        jnp.arange(0, d_model, 2, dtype=jnp.float32) * (-math.log(10000.0) / d_model)
    )
    ang = position * div_term                      # (max_len, d_model // 2)
    pe = jnp.zeros((max_len, d_model), jnp.float32)
    pe = pe.at[:, 0::2].set(jnp.sin(ang))
    pe = pe.at[:, 1::2].set(jnp.cos(ang))
    return pe[:, None, :]                          # (max_len, 1, d_model)


# ------------------------------ wrapper --------------------------------------


def _seq_tile_rows(seq_len, row_bytes, target_bytes=2 * 1024 * 1024):
    """Rows-per-tile: largest multiple of 8 keeping one x block ~target_bytes.

    ~2 MiB per block keeps 2x(in) + 2x(out) (+ 2x bits in training) well under
    the 16 MiB default scoped-VMEM on v5e and leaves headroom on v7x's 64 MiB
    physical VMEM, while being large enough to sit near HBM roofline on v6e.
    """
    rows = max(1, target_bytes // max(row_bytes, 1))
    if rows >= seq_len:
        return seq_len
    rows = max(8, (rows // 8) * 8)
    return min(rows, seq_len)


def positional_encoding_forward(x, pe, *, dropout_p=0.1, training=False, rng_key=None):
    """x: (seq_len, batch, d_model); pe: (max_len, 1, d_model)."""
    S, B, D = x.shape
    pe_slice = pe[:S, 0, :].astype(x.dtype)        # (S, D), plain-JAX glue

    if D % 128 == 0:
        # Lane axis already dense; keep 3D so pe stays a tiny (TS, 1, D) block.
        x_in = x
        pe_in = pe_slice[:, None, :]               # (S, 1, D)
        x_tail, pe_tail, zero_tail = (B, D), (1, D), (0, 0)
    else:
        # Fold batch into the lane axis so loads/stores are lane-dense;
        # pre-broadcast pe to match (wrapper-side layout plumbing).
        x_in = x.reshape(S, B * D)
        pe_in = jnp.broadcast_to(pe_slice[:, None, :], (S, B, D)).reshape(S, B * D)
        x_tail, pe_tail, zero_tail = (B * D,), (B * D,), (0,)

    row_bytes = B * D * x.dtype.itemsize
    ts = _seq_tile_rows(S, row_bytes)
    grid = (pl.cdiv(S, ts),)

    x_spec = pl.BlockSpec((ts,) + x_tail, lambda i: (i,) + zero_tail)
    pe_spec = pl.BlockSpec((ts,) + pe_tail, lambda i: (i,) + zero_tail)
    out_spec = pl.BlockSpec((ts,) + x_tail, lambda i: (i,) + zero_tail)
    cparams = pltpu.CompilerParams(
        dimension_semantics=("parallel",),         # v7x: shard grid across 2 TCs
        vmem_limit_bytes=32 * 1024 * 1024,
    )
    out_shape = jax.ShapeDtypeStruct(x_in.shape, x.dtype)

    if (not training) or dropout_p == 0.0:
        out = pl.pallas_call(
            _pe_add_kernel,
            grid=grid,
            in_specs=[x_spec, pe_spec],
            out_specs=out_spec,
            out_shape=out_shape,
            compiler_params=cparams,
        )(x_in, pe_in)
    else:
        if rng_key is None:
            rng_key = jax.random.PRNGKey(0)
        bits = jax.random.bits(rng_key, x_in.shape, dtype=jnp.uint32)
        threshold = min(int(round(dropout_p * (1 << 32))), (1 << 32) - 1)
        scale = 1.0 / (1.0 - dropout_p)
        out = pl.pallas_call(
            functools.partial(
                _pe_add_dropout_kernel, threshold=threshold, scale=scale
            ),
            grid=grid,
            in_specs=[x_spec, pe_spec, x_spec],    # bits tiled like x
            out_specs=out_spec,
            out_shape=out_shape,
            compiler_params=cparams,
        )(x_in, pe_in, bits)

    return out.reshape(S, B, D)


# ------------------------------- main ----------------------------------------

if __name__ == "__main__":
    d_model = 32
    max_len = 100
    seq_len = 8
    batch = 2
    dropout_p = 0.1

    key = jax.random.PRNGKey(0)
    x = jax.random.normal(key, (seq_len, batch, d_model), dtype=jnp.float32)

    pe = make_positional_encoding(max_len, d_model)
    ref = x + pe[:seq_len, 0, :][:, None, :]

    # Eval-mode forward (dropout = identity): must match the pure-JAX reference.
    out_eval = positional_encoding_forward(x, pe, dropout_p=dropout_p, training=False)
    out_eval = jax.block_until_ready(out_eval)
    assert out_eval.shape == x.shape and out_eval.dtype == x.dtype
    assert jnp.allclose(out_eval, ref, atol=1e-6), "eval-mode mismatch"

    # Training-mode forward (inverted dropout): surviving elements equal
    # ref / (1 - p); dropped elements are exactly zero.
    out_train = positional_encoding_forward(
        x, pe, dropout_p=dropout_p, training=True, rng_key=jax.random.PRNGKey(1234)
    )
    out_train = jax.block_until_ready(out_train)
    assert out_train.shape == x.shape
    assert bool(jnp.all(jnp.isfinite(out_train)))
    scale = 1.0 / (1.0 - dropout_p)
    expected = ref * scale
    kept = out_train != 0
    assert bool(
        jnp.allclose(jnp.where(kept, out_train, expected), expected, atol=1e-5)
    ), "training-mode kept-element mismatch"
    assert float(jnp.mean(kept.astype(jnp.float32))) > 0.5, "too many dropped elements"

    print("KERNEL_OK")
</pallas_src>

<mosaic_0001>
module attributes {stable_mosaic.version = 11 : i64} {
  func.func @_pe_add_kernel(%arg0: i32, %arg1: memref<8x64xf32, #tpu.memory_space<vmem>>, %arg2: memref<8x64xf32, #tpu.memory_space<vmem>>, %arg3: memref<8x64xf32, #tpu.memory_space<vmem>>) attributes {dimension_semantics = [#tpu.dimension_semantics<parallel>], iteration_bounds = array<i64: 1>, scalar_prefetch = 0 : i64, scratch_operands = 0 : i64, tpu.core_type = #tpu.core_type<tc>, window_params = [{transform_indices = @transform_0, window_bounds = array<i64: 8, 64>}, {transform_indices = @transform_1, window_bounds = array<i64: 8, 64>}, {transform_indices = @transform_2, window_bounds = array<i64: 8, 64>}]} {
    %c0 = arith.constant 0 : index
    %c0_0 = arith.constant 0 : index
    %0 = vector.load %arg1[%c0, %c0_0] : memref<8x64xf32, #tpu.memory_space<vmem>>, vector<8x64xf32>
    %c0_1 = arith.constant 0 : index
    %c0_2 = arith.constant 0 : index
    %1 = vector.load %arg2[%c0_1, %c0_2] : memref<8x64xf32, #tpu.memory_space<vmem>>, vector<8x64xf32>
    %2 = arith.addf %0, %1 : vector<8x64xf32>
    %c0_3 = arith.constant 0 : index
    %c0_4 = arith.constant 0 : index
    %3 = vector.load %arg3[%c0_3, %c0_4] : memref<8x64xf32, #tpu.memory_space<vmem>>, vector<8x64xf32>
    tpu.vector_store %arg3[%c0_3, %c0_4], %2 {strides = array<i32>} : memref<8x64xf32, #tpu.memory_space<vmem>>, vector<8x64xf32>,
    return
  }
  func.func @transform_0(%arg0: i32) -> (i32, i32) {
    %c0_i32 = arith.constant 0 : i32
    %c0_i32_0 = arith.constant 0 : i32
    return %arg0, %c0_i32 : i32, i32
  }
  func.func @transform_1(%arg0: i32) -> (i32, i32) {
    %c0_i32 = arith.constant 0 : i32
    %c0_i32_0 = arith.constant 0 : i32
    return %arg0, %c0_i32 : i32, i32
  }
  func.func @transform_2(%arg0: i32) -> (i32, i32) {
    %c0_i32 = arith.constant 0 : i32
    %c0_i32_0 = arith.constant 0 : i32
    return %arg0, %c0_i32 : i32, i32
  }
}

</mosaic_0001>

<llo_original>
// kernel: tpu_custom_call.1
$region0: #{tpu_custom_call.1}
  #allocation0 [shape = 'u32[]', space=smem, size = 0x4, offset = 0x4, fixed_abs, tag = 'smem constant byte address 0x4 - core index']
  #allocation1 [shape = 'u32[144,128]{1,0:T(1,128)}', space=vmem, size = 0x12000, scoped, tag = 'internal scratch']
  %s0 = inlined_call_operand.hbm [shape: f32[8,64], index: 0, kind: input, shape index: {}]
  %s1 = inlined_call_operand.hbm [shape: f32[8,64], index: 1, kind: input, shape index: {}]
  %s2 = inlined_call_operand.hbm [shape: f32[8,64], index: 2, kind: output, shape index: {}]
  %s3 = sld [smem:[#allocation0]]
  $region26: #{tpu_custom_call.1} parent=0
    _
  %s5 = ssub.s32 1, %s3
  %s6 = scalar_select 0, %s5, %s3
  $region1: #{tpu_custom_call.1} parent=0
    #allocation2 [shape = 'u8[4096]{0}', space=vmem, size = 0x1000, scoped, tag = 'input window, operand 0, single buffered']
    #allocation3 [shape = 's32[1]{0}', space=sflag, size = 0x4, scoped, tag = 'scoped memory for tpu_custom_call.1']
    #allocation4 [shape = 's32[1]{0}', space=sflag, size = 0x4, scoped, tag = 'scoped memory for tpu_custom_call.1']
    #allocation5 [shape = 'u8[4096]{0}', space=vmem, size = 0x1000, scoped, tag = 'input window, operand 1, single buffered']
    #allocation6 [shape = 's32[1]{0}', space=sflag, size = 0x4, scoped, tag = 'scoped memory for tpu_custom_call.1']
    #allocation7 [shape = 'u8[4096]{0}', space=vmem, size = 0x1000, scoped, tag = 'output window, operand 0, single buffered']
    %7 = vsyncpa [#allocation3], 0
    %8 = vsyncpa [#allocation6], 0
    %9 = vsyncpa [#allocation4], 0
    // Predicated region
    $region2: #{tpu_custom_call.1} parent=1 // pred_check
      _
    $region3: #{tpu_custom_call.1} parent=1 // pred_check_branch
      %11 = sbr.rel (0) target = $region5
    $region4: #{tpu_custom_call.1} parent=1 // pred_region
      %s13 = ssub.s32 128, 128
      %14 = vsyncadd [#allocation3], %s13
      %s16 = sshll.u32 [#allocation2], 4
      %s17 = int_to_ptr.vmem [resolvable:$true] %s16
      %19 = dma.hbm_to_vmem [thread:$0]  %s0, 128, %s17, [#allocation3]
    $region5: #{tpu_custom_call.1} parent=1 // pred_fallthru
      _
    // Predicated region
    $region6: #{tpu_custom_call.1} parent=1 // pred_check
      _
    $region7: #{tpu_custom_call.1} parent=1 // pred_check_branch
      %21 = sbr.rel (0) target = $region9
    $region8: #{tpu_custom_call.1} parent=1 // pred_region
      %s23 = ssub.s32 128, 128
      %24 = vsyncadd [#allocation6], %s23
      %s26 = sshll.u32 [#allocation5], 4
      %s27 = int_to_ptr.vmem [resolvable:$true] %s26
      %29 = dma.hbm_to_vmem [thread:$0]  %s1, 128, %s27, [#allocation6]
    $region9: #{tpu_custom_call.1} parent=1 // pred_fallthru
      _
    // Predicated region
    $region10: #{tpu_custom_call.1} parent=1 // pred_check
      _
    $region11: #{tpu_custom_call.1} parent=1 // pred_check_branch
      %31 = sbr.rel (0) target = $region13
    $region12: #{tpu_custom_call.1} parent=1 // pred_region
      %32 = dma.done [#allocation3], 128
    $region13: #{tpu_custom_call.1} parent=1 // pred_fallthru
      _
    // Predicated region
    $region14: #{tpu_custom_call.1} parent=1 // pred_check
      _
    $region15: #{tpu_custom_call.1} parent=1 // pred_check_branch
      %34 = sbr.rel (0) target = $region17
    $region16: #{tpu_custom_call.1} parent=1 // pred_region
      %35 = dma.done [#allocation6], 128
    $region17: #{tpu_custom_call.1} parent=1 // pred_fallthru
      _
    %v36 = vld [vmem:[#allocation2] sm:$0xff]
    %v37 = vld [vmem:[#allocation5] sm:$0xff]
    %v38 = vadd.f32 %v36, %v37
    %vm39 = vcmask 523264
    %40 = vst.msk [vmem:[#allocation7] sm:$0xff] %vm39, %v38
    // Predicated region
    $region18: #{tpu_custom_call.1} parent=1 // pred_check
      _
    $region19: #{tpu_custom_call.1} parent=1 // pred_check_branch
      %42 = sbr.rel (0) target = $region21
    $region20: #{tpu_custom_call.1} parent=1 // pred_region
      %s44 = ssub.s32 128, 128
      %45 = vsyncadd [#allocation4], %s44
      %s47 = sshll.u32 [#allocation7], 4
      %s48 = int_to_ptr.vmem [resolvable:$true] %s47
      %50 = dma.vmem_to_hbm [thread:$0]  %s48, 128, %s2, [#allocation4]
    $region21: #{tpu_custom_call.1} parent=1 // pred_fallthru
      _
    // Predicated region
    $region22: #{tpu_custom_call.1} parent=1 // pred_check
      _
    $region23: #{tpu_custom_call.1} parent=1 // pred_check_branch
      %52 = sbr.rel (0) target = $region25
    $region24: #{tpu_custom_call.1} parent=1 // pred_region
      %53 = dma.done [#allocation4], 128
    $region25: #{tpu_custom_call.1} parent=1 // pred_fallthru
      _
    %54 = vsyncpa [#allocation3], 1
    %55 = vsyncpa [#allocation6], 1
    %56 = vsyncpa [#allocation4], 1

</llo_original>
